<compile_context>
chip_gen: v6e
topology: v6e:2x2x1
jax: 0.10.0
libtpu: 0.0.40
codegen_flags: <defaults>
</compile_context>

<pallas_src>
import jax
import jax.numpy as jnp
from jax.experimental import pallas as pl
from jax.experimental.pallas import tpu as pltpu


def _dfp_kernel(sac_ref, s1m_ref, x0_ref, noise_ref, xt_ref):
    """Fused x_t = sqrt(ac)[t] * x_0 + sqrt(1-ac)[t] * noise for one tile.

    sac_ref, s1m_ref : SMEM (B,) float32 scalar-prefetch tables (per-sample scales)
    x0_ref, noise_ref: VMEM (1, tr, Lw) input tiles
    xt_ref           : VMEM (1, tr, Lw) output tile
    """
    b = pl.program_id(0)                       # batch index of this tile
    a = sac_ref[b]                             # scalar, broadcast over the tile
    s = s1m_ref[b]
    x0 = x0_ref[...].astype(jnp.float32)
    nz = noise_ref[...].astype(jnp.float32)
    xt_ref[...] = (a * x0 + s * nz).astype(xt_ref.dtype)


def _choose_layout(N, itemsize, target_bytes=2 << 20):
    """Pick (lane_width, rows, padded_rows, rows_per_block).

    Lane width is a multiple of 128; rows-per-block is a multiple of 8 (full
    sublanes) unless the sample has fewer than 8 rows, in which case the block
    spans the full (array-sized) row dim.  Block size targets ~target_bytes per
    stream per grid step.
    """
    lw = 512 if N >= 8 * 512 else 128
    r = -(-N // lw)                            # ceil(N / lw)
    if r < 8:
        return lw, r, r, r                     # full second-to-last dim block
    max_tr = max(8, (target_bytes // (lw * itemsize)) // 8 * 8)
    tr = min(max_tr, -(-r // 8) * 8)           # multiple of 8
    r_pad = -(-r // tr) * tr                   # rows padded to a multiple of tr
    return lw, r, r_pad, tr


class DiffusionForwardProcess:
    """JAX/Pallas port of the PyTorch DiffusionForwardProcess."""

    def __init__(self, betas):
        betas = jnp.asarray(betas, dtype=jnp.float32)
        self.betas = betas
        self.alphas = 1.0 - betas
        self.alphas_cumprod = jnp.cumprod(self.alphas, axis=0)
        self.sqrt_alphas_cumprod = jnp.sqrt(self.alphas_cumprod)
        self.sqrt_1m_alphas_cumprod = jnp.sqrt(1.0 - self.alphas_cumprod)

    def __call__(self, x_0, t, key=None, seed=0):
        if key is None:
            key = jax.random.PRNGKey(int(seed))

        B, C, H, W = x_0.shape
        N = C * H * W
        dtype = x_0.dtype
        itemsize = jnp.dtype(dtype).itemsize

        # Gaussian noise, same contract as torch.randn in the reference module.
        noise = jax.random.normal(key, (B, C, H, W), dtype=dtype)

        # Per-sample scale gather done once in the wrapper (tiny), fed to the
        # kernel as SMEM scalar-prefetch tables.
        t_idx = t.astype(jnp.int32)
        sac = self.sqrt_alphas_cumprod[t_idx].astype(jnp.float32)      # (B,)
        s1m = self.sqrt_1m_alphas_cumprod[t_idx].astype(jnp.float32)   # (B,)

        # Sublane-dense layout: (B, R_pad, Lw), Lw % 128 == 0, tr % 8 == 0.
        lw, _r, r_pad, tr = _choose_layout(N, itemsize)
        n_pad = r_pad * lw

        x_flat = x_0.reshape(B, N)
        nz_flat = noise.reshape(B, N)
        if n_pad != N:
            pad = ((0, 0), (0, n_pad - N))
            x_flat = jnp.pad(x_flat, pad)
            nz_flat = jnp.pad(nz_flat, pad)
        x3 = x_flat.reshape(B, r_pad, lw)
        nz3 = nz_flat.reshape(B, r_pad, lw)

        chunks = r_pad // tr
        img_spec = pl.BlockSpec(
            (1, tr, lw), lambda b, c, sac_ref, s1m_ref: (b, c, 0)
        )

        block_bytes = tr * lw * itemsize
        # 3 streams (x0, noise, x_t) x double buffering + slack; keep well under
        # every generation's scoped-VMEM default (16 MiB on v5e).
        vmem_limit = int(min(max(3 * 2 * block_bytes + (2 << 20), 12 << 20),
                             100 << 20))

        x_t3 = pl.pallas_call(
            _dfp_kernel,
            out_shape=jax.ShapeDtypeStruct((B, r_pad, lw), dtype),
            grid_spec=pltpu.PrefetchScalarGridSpec(
                num_scalar_prefetch=2,              # sac, s1m -> SMEM
                grid=(B, chunks),
                in_specs=[img_spec, img_spec],      # x_0, noise
                out_specs=img_spec,                 # x_t
            ),
            compiler_params=pltpu.CompilerParams(
                dimension_semantics=("parallel", "parallel"),
                vmem_limit_bytes=vmem_limit,
            ),
            cost_estimate=pl.CostEstimate(
                flops=int(3 * B * N),
                transcendentals=0,
                bytes_accessed=int(3 * B * N * itemsize),
            ),
        )(sac, s1m, x3, nz3)

        x_t = x_t3.reshape(B, n_pad)[:, :N].reshape(B, C, H, W)
        return x_t, noise


if __name__ == "__main__":
    key = jax.random.PRNGKey(0)
    k_x0, k_t, k_noise = jax.random.split(key, 3)

    B, C, H, W = 2, 4, 16, 16
    T = 10  # number of diffusion timesteps

    # Linear beta schedule (deterministic, in-script).
    betas = jnp.linspace(1e-4, 2e-2, T, dtype=jnp.float32)
    dfp = DiffusionForwardProcess(betas)

    x_0 = jax.random.normal(k_x0, (B, C, H, W), dtype=jnp.float32)
    t = jax.random.randint(k_t, (B,), 0, T, dtype=jnp.int32)

    x_t, noise = dfp(x_0, t, key=k_noise)
    jax.block_until_ready(x_t)
    jax.block_until_ready(noise)

    # Reference: x_t must equal sqrt(ac)[t]*x_0 + sqrt(1-ac)[t]*noise for the
    # *returned* noise (same contract as the PyTorch module).
    sac_ref = dfp.sqrt_alphas_cumprod[t].reshape(B, 1, 1, 1)
    s1m_ref = dfp.sqrt_1m_alphas_cumprod[t].reshape(B, 1, 1, 1)
    x_t_ref = sac_ref * x_0 + s1m_ref * noise

    assert x_t.shape == (B, C, H, W) and noise.shape == (B, C, H, W)
    assert jnp.allclose(x_t, x_t_ref, atol=1e-5, rtol=1e-5), float(
        jnp.max(jnp.abs(x_t - x_t_ref))
    )

    # Loose distribution sanity check on the Gaussian noise (2048 draws).
    m = float(jnp.mean(noise))
    s = float(jnp.std(noise))
    assert abs(m) < 0.2 and 0.7 < s < 1.3, (m, s)

    print("KERNEL_OK")
</pallas_src>

<mosaic_0001>
module attributes {stable_mosaic.version = 11 : i64} {
  func.func @_dfp_kernel(%arg0: i32, %arg1: i32, %arg2: memref<2xf32, #tpu.memory_space<smem>>, %arg3: memref<2xf32, #tpu.memory_space<smem>>, %arg4: memref<1x8x128xf32, #tpu.memory_space<vmem>>, %arg5: memref<1x8x128xf32, #tpu.memory_space<vmem>>, %arg6: memref<1x8x128xf32, #tpu.memory_space<vmem>>) attributes {dimension_semantics = [#tpu.dimension_semantics<parallel>, #tpu.dimension_semantics<parallel>], iteration_bounds = array<i64: 2, 1>, scalar_prefetch = 2 : i64, scratch_operands = 0 : i64, tpu.core_type = #tpu.core_type<tc>, window_params = [{transform_indices = @transform_0, window_bounds = array<i64: 1, 8, 128>}, {transform_indices = @transform_1, window_bounds = array<i64: 1, 8, 128>}, {transform_indices = @transform_2, window_bounds = array<i64: 1, 8, 128>}]} {
    %0 = arith.index_cast %arg0 : i32 to index
    %1 = memref.load %arg2[%0] : memref<2xf32, #tpu.memory_space<smem>>
    %2 = arith.index_cast %arg0 : i32 to index
    %3 = memref.load %arg3[%2] : memref<2xf32, #tpu.memory_space<smem>>
    %c0 = arith.constant 0 : index
    %c0_0 = arith.constant 0 : index
    %c0_1 = arith.constant 0 : index
    %4 = vector.load %arg4[%c0, %c0_0, %c0_1] : memref<1x8x128xf32, #tpu.memory_space<vmem>>, vector<1x8x128xf32>
    %c0_2 = arith.constant 0 : index
    %c0_3 = arith.constant 0 : index
    %c0_4 = arith.constant 0 : index
    %5 = vector.load %arg5[%c0_2, %c0_3, %c0_4] : memref<1x8x128xf32, #tpu.memory_space<vmem>>, vector<1x8x128xf32>
    %6 = vector.broadcast %1 : f32 to vector<1x8x128xf32>
    %7 = arith.mulf %6, %4 : vector<1x8x128xf32>
    %8 = vector.broadcast %3 : f32 to vector<1x8x128xf32>
    %9 = arith.mulf %8, %5 : vector<1x8x128xf32>
    %10 = arith.addf %7, %9 : vector<1x8x128xf32>
    %c0_5 = arith.constant 0 : index
    %c0_6 = arith.constant 0 : index
    %c0_7 = arith.constant 0 : index
    %11 = vector.load %arg6[%c0_5, %c0_6, %c0_7] : memref<1x8x128xf32, #tpu.memory_space<vmem>>, vector<1x8x128xf32>
    tpu.vector_store %arg6[%c0_5, %c0_6, %c0_7], %10 {strides = array<i32>} : memref<1x8x128xf32, #tpu.memory_space<vmem>>, vector<1x8x128xf32>,
    return
  }
  func.func @transform_0(%arg0: i32, %arg1: i32, %arg2: memref<2xf32, #tpu.memory_space<smem>>, %arg3: memref<2xf32, #tpu.memory_space<smem>>) -> (i32, i32, i32) {
    %c0_i32 = arith.constant 0 : i32
    %c0_i32_0 = arith.constant 0 : i32
    return %arg0, %arg1, %c0_i32 : i32, i32, i32
  }
  func.func @transform_1(%arg0: i32, %arg1: i32, %arg2: memref<2xf32, #tpu.memory_space<smem>>, %arg3: memref<2xf32, #tpu.memory_space<smem>>) -> (i32, i32, i32) {
    %c0_i32 = arith.constant 0 : i32
    %c0_i32_0 = arith.constant 0 : i32
    return %arg0, %arg1, %c0_i32 : i32, i32, i32
  }
  func.func @transform_2(%arg0: i32, %arg1: i32, %arg2: memref<2xf32, #tpu.memory_space<smem>>, %arg3: memref<2xf32, #tpu.memory_space<smem>>) -> (i32, i32, i32) {
    %c0_i32 = arith.constant 0 : i32
    %c0_i32_0 = arith.constant 0 : i32
    return %arg0, %arg1, %c0_i32 : i32, i32, i32
  }
}

</mosaic_0001>

<llo_original>
// kernel: tpu_custom_call.1
$region0: #{tpu_custom_call.1}
  #allocation0 [shape = 'u32[]', space=smem, size = 0x4, offset = 0x4, fixed_abs, tag = 'smem constant byte address 0x4 - core index']
  #allocation1 [shape = 'u32[144,128]{1,0:T(1,128)}', space=vmem, size = 0x12000, scoped, tag = 'internal scratch']
  #allocation2 [shape = 's32[1]{0}', space=sflag, size = 0x4, scoped, tag = 'scoped memory for tpu_custom_call.1']
  #allocation3 [shape = 'u8[512]{0}', space=smem, size = 0x200, scoped, tag = 'prefetched SMEM operand 0']
  #allocation4 [shape = 'u8[512]{0}', space=smem, size = 0x200, scoped, tag = 'prefetched SMEM operand 1']
  %s0 = inlined_call_operand.hbm [shape: f32[2], index: 0, kind: input, shape index: {}]
  %s1 = inlined_call_operand.vmem [shape: f32[2], index: 1, kind: input, shape index: {}]
  %s2 = inlined_call_operand.hbm [shape: f32[2,8,128], index: 2, kind: input, shape index: {}]
  %s3 = inlined_call_operand.hbm [shape: f32[2,8,128], index: 3, kind: input, shape index: {}]
  %s4 = inlined_call_operand.hbm [shape: f32[2,8,128], index: 4, kind: output, shape index: {}]
  %s5 = sld [smem:[#allocation0]]
  $region49: #{tpu_custom_call.1} parent=0
    _
  %s7 = ssub.s32 1, %s5
  %s8 = scalar_select 0, %s7, %s5
  %10 = dma.hbm_to_smem %s0, 16, [#allocation3], [#allocation2]
  %s11 = sshll.u32 %s1, 4
  %s12 = int_to_ptr.vmem [resolvable:$true] %s11
  %14 = dma.vmem_to_smem %s12, 16, [#allocation4], [#allocation2]
  %15 = dma.done [#allocation2], 32
  %16 = sfence
  $region1: #{tpu_custom_call.1} parent=0
    #allocation5 [shape = 'u8[8192]{0}', space=vmem, size = 0x2000, scoped, tag = 'input window, operand 2']
    #allocation6 [shape = 's32[2]{0}', space=sflag, size = 0x8, scoped, tag = 'scoped memory for tpu_custom_call.1']
    #allocation7 [shape = 's32[2]{0}', space=sflag, size = 0x8, scoped, tag = 'scoped memory for tpu_custom_call.1']
    #allocation8 [shape = 'u8[8192]{0}', space=vmem, size = 0x2000, scoped, tag = 'input window, operand 3']
    #allocation9 [shape = 's32[2]{0}', space=sflag, size = 0x8, scoped, tag = 'scoped memory for tpu_custom_call.1']
    #allocation10 [shape = 'u8[8192]{0}', space=vmem, size = 0x2000, scoped, tag = 'output window, operand 0']
    %17 = vsyncpa [#allocation6], 0
    %s18 = scalar_lea.sflag [#allocation6], 1
    %19 = vsyncpa %s18, 0
    %20 = vsyncpa [#allocation9], 0
    %s21 = scalar_lea.sflag [#allocation9], 1
    %22 = vsyncpa %s21, 0
    %23 = vsyncpa [#allocation7], 0
    %s24 = scalar_lea.sflag [#allocation7], 1
    %25 = vsyncpa %s24, 0
    loop: start=0, step=1, limit=4
    $region2: #{tpu_custom_call.1} parent=1 // loop_pre_header
      _
    $region3: #{tpu_custom_call.1} parent=1 // loop_header
      %s27 = sphi 0, %s31
      %p28 = scmp.ge.s32.totalorder %s27, 4
      %s34 = sphi 0, %s46
      %s35 = sphi 0, %s42
      %s36 = sphi 0, %s34
      %s37 = sphi 0, %s35
      %s38 = sphi 0, %s36
      %s39 = sphi 0, %s37
      %s51 = sphi 0, %s53
      %s54 = sphi 0, %s51
      %s55 = sphi 0, %s54
      %s71 = sphi 0, %s55
      %s79 = sphi 0, %s81
      %s82 = sphi 0, %s79
      %s83 = sphi 0, %s82
      %s99 = sphi 0, %s83
      %s107 = sphi 0, %s109
      %s110 = sphi 0, %s107
      %s111 = sphi 0, %s110
      %s127 = sphi 0, %s111
    $region4: #{tpu_custom_call.1} parent=1 // loop_header_branch
      %30 = sbr.rel (%p28) target = $region8
    $region5: #{tpu_custom_call.1} parent=1 // loop_body
      %s32 = ssub.s32 %s27, 1
      %s33 = ssub.s32 %s27, 2
      %s40 = sadd.s32 1, %s35
      %p41 = scmp.ge.s32.totalorder %s40, 1
      %s42 = scalar_select %p41, 0, %s40
      %s43 = sadd.s32 1, %s34
      %s44 = scalar_select %p41, %s43, %s34
      %p45 = scmp.ge.s32.totalorder %s44, 2
      %s46 = scalar_select %p45, 0, %s44
      %s47 = ssub.s32 %s34, %s46
      %s48 = ssub.s32 %s35, %s42
      %s49 = sor.u32 %s47, %s48
      %p50 = scmp.eq.s32.totalorder %s49, 0
      %s52 = sadd.s32 %s51, 1
      %s53 = scalar_select %p50, %s51, %s52
      %p56 = pneg %p50
      %p57 = scmp.eq.s32.totalorder %s27, 1
      %p58 = por %p56, %p57
      %p59 = scmp.ne.s32.totalorder %s51, %s54
      %p60 = scmp.eq.s32.totalorder %s27, 0
      %p61 = por %p59, %p60
      %p62 = scmp.ne.s32.totalorder %s51, %s54
      %p63 = scmp.eq.s32.totalorder %s32, 1
      %p64 = por %p62, %p63
      %p65 = scmp.ne.s32.totalorder %s54, %s55
      %p66 = scmp.eq.s32.totalorder %s32, 0
      %p67 = por %p65, %p66
      %p68 = scmp.ne.s32.totalorder %s54, %s55
      %p69 = scmp.eq.s32.totalorder %s33, 1
      %p70 = por %p68, %p69
      %p72 = scmp.ne.s32.totalorder %s55, %s71
      %p73 = scmp.eq.s32.totalorder %s33, 0
      %p74 = por %p72, %p73
      %s75 = ssub.s32 %s34, %s46
      %s76 = ssub.s32 %s35, %s42
      %s77 = sor.u32 %s75, %s76
      %p78 = scmp.eq.s32.totalorder %s77, 0
      %s80 = sadd.s32 %s79, 1
      %s81 = scalar_select %p78, %s79, %s80
      %p84 = pneg %p78
      %p85 = scmp.eq.s32.totalorder %s27, 1
      %p86 = por %p84, %p85
      %p87 = scmp.ne.s32.totalorder %s79, %s82
      %p88 = scmp.eq.s32.totalorder %s27, 0
      %p89 = por %p87, %p88
      %p90 = scmp.ne.s32.totalorder %s79, %s82
      %p91 = scmp.eq.s32.totalorder %s32, 1
      %p92 = por %p90, %p91
      %p93 = scmp.ne.s32.totalorder %s82, %s83
      %p94 = scmp.eq.s32.totalorder %s32, 0
      %p95 = por %p93, %p94
      %p96 = scmp.ne.s32.totalorder %s82, %s83
      %p97 = scmp.eq.s32.totalorder %s33, 1
      %p98 = por %p96, %p97
      %p100 = scmp.ne.s32.totalorder %s83, %s99
      %p101 = scmp.eq.s32.totalorder %s33, 0
      %p102 = por %p100, %p101
      %s103 = ssub.s32 %s34, %s46
      %s104 = ssub.s32 %s35, %s42
      %s105 = sor.u32 %s103, %s104
      %p106 = scmp.eq.s32.totalorder %s105, 0
      %s108 = sadd.s32 %s107, 1
      %s109 = scalar_select %p106, %s107, %s108
      %p112 = pneg %p106
      %p113 = scmp.eq.s32.totalorder %s27, 1
      %p114 = por %p112, %p113
      %p115 = scmp.ne.s32.totalorder %s107, %s110
      %p116 = scmp.eq.s32.totalorder %s27, 0
      %p117 = por %p115, %p116
      %p118 = scmp.ne.s32.totalorder %s107, %s110
      %p119 = scmp.eq.s32.totalorder %s32, 1
      %p120 = por %p118, %p119
      %p121 = scmp.ne.s32.totalorder %s110, %s111
      %p122 = scmp.eq.s32.totalorder %s32, 0
      %p123 = por %p121, %p122
      %p124 = scmp.ne.s32.totalorder %s110, %s111
      %p125 = scmp.eq.s32.totalorder %s33, 1
      %p126 = por %p124, %p125
      %p128 = scmp.ne.s32.totalorder %s111, %s127
      %p129 = scmp.eq.s32.totalorder %s33, 0
      %p130 = por %p128, %p129
      %p131 = scmp.le.s32.totalorder 1, %s27
      %p132 = scmp.lt.s32.totalorder %s27, 3
      %p133 = pnand %p131, %p132
      %p134 = pneg %p133
      // Predicated region
      $region9: #{tpu_custom_call.1} parent=5 // pred_check
        _
      $region10: #{tpu_custom_call.1} parent=5 // pred_check_branch
        %136 = sbr.rel (%p133) target = $region12
      $region11: #{tpu_custom_call.1} parent=5 // pred_region
        %s137 = ssub.s32 %s27, 1
      $region12: #{tpu_custom_call.1} parent=5 // pred_fallthru
        _
      %p138 = scmp.lt.s32.totalorder %s27, 2
      // Predicated region
      $region13: #{tpu_custom_call.1} parent=5 // pred_check
        %p139 = pneg %p138
      $region14: #{tpu_custom_call.1} parent=5 // pred_check_branch
        %141 = sbr.rel (%p139) target = $region16
      $region15: #{tpu_custom_call.1} parent=5 // pred_region
        // Predicated region
        $region17: #{tpu_custom_call.1} parent=15 // pred_check
          %p142 = pneg %p61
        $region18: #{tpu_custom_call.1} parent=15 // pred_check_branch
          %144 = sbr.rel (%p142) target = $region20
        $region19: #{tpu_custom_call.1} parent=15 // pred_region
          %s145 = sand.u32 %s51, 1
          %s146 = scalar_lea.sflag [#allocation6], %s145
          %s147 = sand.u32 %s51, 1
          %s148 = smul.addr %s147, 8
          %s149 = scalar_lea.vmem [#allocation5], %s148
          %s151 = ssub.s32 128, 128
          %152 = vsyncadd %s146, %s151
          %s153 = sadd.s32 %s35, %s34
          %s154 = smul.addr %s153, 128
          %s155 = scalar_lea.hbm %s2, %s154
          %s157 = sshll.u32 %s149, 4
          %s158 = int_to_ptr.vmem [resolvable:$true] %s157
          %160 = dma.hbm_to_vmem [thread:$0]  %s155, 128, %s158, %s146
        $region20: #{tpu_custom_call.1} parent=15 // pred_fallthru
          _
        // Predicated region
        $region21: #{tpu_custom_call.1} parent=15 // pred_check
          %p161 = pneg %p89
        $region22: #{tpu_custom_call.1} parent=15 // pred_check_branch
          %163 = sbr.rel (%p161) target = $region24
        $region23: #{tpu_custom_call.1} parent=15 // pred_region
          %s164 = sand.u32 %s79, 1
          %s165 = scalar_lea.sflag [#allocation9], %s164
          %s166 = sand.u32 %s79, 1
          %s167 = smul.addr %s166, 8
          %s168 = scalar_lea.vmem [#allocation8], %s167
          %s170 = ssub.s32 128, 128
          %171 = vsyncadd %s165, %s170
          %s172 = sadd.s32 %s35, %s34
          %s173 = smul.addr %s172, 128
          %s174 = scalar_lea.hbm %s3, %s173
          %s176 = sshll.u32 %s168, 4
          %s177 = int_to_ptr.vmem [resolvable:$true] %s176
          %179 = dma.hbm_to_vmem [thread:$0]  %s174, 128, %s177, %s165
        $region24: #{tpu_custom_call.1} parent=15 // pred_fallthru
          _
      $region16: #{tpu_custom_call.1} parent=5 // pred_fallthru
        _
      %p180 = scmp.le.s32.totalorder 1, %s27
      %p181 = scmp.lt.s32.totalorder %s27, 3
      %p182 = pnand %p180, %p181
      %p183 = pneg %p182
      // Predicated region
      $region25: #{tpu_custom_call.1} parent=5 // pred_check
        _
      $region26: #{tpu_custom_call.1} parent=5 // pred_check_branch
        %185 = sbr.rel (%p182) target = $region28
      $region27: #{tpu_custom_call.1} parent=5 // pred_region
        %s186 = ssub.s32 %s27, 1
        %s187 = sand.u32 %s54, 1
        %s188 = scalar_lea.sflag [#allocation6], %s187
        %s189 = sand.u32 %s54, 1
        %s190 = smul.addr %s189, 8
        %s191 = scalar_lea.vmem [#allocation5], %s190
        // Predicated region
        $region29: #{tpu_custom_call.1} parent=27 // pred_check
          %p192 = pneg %p67
        $region30: #{tpu_custom_call.1} parent=27 // pred_check_branch
          %194 = sbr.rel (%p192) target = $region32
        $region31: #{tpu_custom_call.1} parent=27 // pred_region
          %195 = dma.done %s188, 128
        $region32: #{tpu_custom_call.1} parent=27 // pred_fallthru
          _
        %s196 = sand.u32 %s82, 1
        %s197 = scalar_lea.sflag [#allocation9], %s196
        %s198 = sand.u32 %s82, 1
        %s199 = smul.addr %s198, 8
        %s200 = scalar_lea.vmem [#allocation8], %s199
        // Predicated region
        $region33: #{tpu_custom_call.1} parent=27 // pred_check
          %p201 = pneg %p95
        $region34: #{tpu_custom_call.1} parent=27 // pred_check_branch
          %203 = sbr.rel (%p201) target = $region36
        $region35: #{tpu_custom_call.1} parent=27 // pred_region
          %204 = dma.done %s197, 128
        $region36: #{tpu_custom_call.1} parent=27 // pred_fallthru
          _
        %s205 = sand.u32 %s54, 1
        %s206 = scalar_lea.sflag [#allocation6], %s205
        %s207 = sand.u32 %s54, 1
        %s208 = smul.addr %s207, 8
        %s209 = scalar_lea.vmem [#allocation5], %s208
        %p210 = pneg %p67
        %p211 = pneg %p64
        %s212 = sand.u32 %s82, 1
        %s213 = scalar_lea.sflag [#allocation9], %s212
        %s214 = sand.u32 %s82, 1
        %s215 = smul.addr %s214, 8
        %s216 = scalar_lea.vmem [#allocation8], %s215
        %p217 = pneg %p95
        %p218 = pneg %p92
        %p219 = pneg %p123
        %p220 = pneg %p120
        %s221 = sand.u32 %s110, 1
        %s222 = scalar_lea.sflag [#allocation7], %s221
        %s223 = sand.u32 %s110, 1
        %s224 = smul.addr %s223, 8
        %s225 = scalar_lea.vmem [#allocation10], %s224
        %s226 = sld [smem:[#allocation3 + %s36]]
        %s227 = sld [smem:[#allocation4 + %s36]]
        %v228 = vld [vmem:[%s191] sm:$0xff]
        %v229 = vld [vmem:[%s200] sm:$0xff]
        %v230 = vstv %s226
        %v231 = vmul.f32 %v230, %v228
        %v232 = vstv %s227
        %v233 = vmul.f32 %v232, %v229
        %v234 = vadd.f32 %v231, %v233
        %235 = vst [vmem:[%s225] sm:$0xff] %v234
        %s236 = sand.u32 %s110, 1
        %s237 = scalar_lea.sflag [#allocation7], %s236
        %s238 = sand.u32 %s110, 1
        %s239 = smul.addr %s238, 8
        %s240 = scalar_lea.vmem [#allocation10], %s239
        // Predicated region
        $region37: #{tpu_custom_call.1} parent=27 // pred_check
          %p241 = pneg %p120
        $region38: #{tpu_custom_call.1} parent=27 // pred_check_branch
          %243 = sbr.rel (%p241) target = $region40
        $region39: #{tpu_custom_call.1} parent=27 // pred_region
          %s245 = ssub.s32 128, 128
          %246 = vsyncadd %s237, %s245
          %s247 = sadd.s32 %s37, %s36
          %s248 = smul.addr %s247, 128
          %s249 = scalar_lea.hbm %s4, %s248
          %s251 = sshll.u32 %s240, 4
          %s252 = int_to_ptr.vmem [resolvable:$true] %s251
          %254 = dma.vmem_to_hbm [thread:$0]  %s252, 128, %s249, %s237
        $region40: #{tpu_custom_call.1} parent=27 // pred_fallthru
          _
      $region28: #{tpu_custom_call.1} parent=5 // pred_fallthru
        _
      %p255 = scmp.le.s32.totalorder 2, %s27
      // Predicated region
      $region41: #{tpu_custom_call.1} parent=5 // pred_check
        %p256 = pneg %p255
      $region42: #{tpu_custom_call.1} parent=5 // pred_check_branch
        %258 = sbr.rel (%p256) target = $region44
      $region43: #{tpu_custom_call.1} parent=5 // pred_region
        %s259 = ssub.s32 %s27, 2
        // Predicated region
        $region45: #{tpu_custom_call.1} parent=43 // pred_check
          %p260 = pneg %p126
        $region46: #{tpu_custom_call.1} parent=43 // pred_check_branch
          %262 = sbr.rel (%p260) target = $region48
        $region47: #{tpu_custom_call.1} parent=43 // pred_region
          %s263 = sand.u32 %s111, 1
          %s264 = scalar_lea.sflag [#allocation7], %s263
          %s265 = sand.u32 %s111, 1
          %s266 = smul.addr %s265, 8
          %s267 = scalar_lea.vmem [#allocation10], %s266
          %268 = dma.done %s264, 128
        $region48: #{tpu_custom_call.1} parent=43 // pred_fallthru
          _
      $region44: #{tpu_custom_call.1} parent=5 // pred_fallthru
        _
    $region6: #{tpu_custom_call.1} parent=1 // loop_footer
      %s31 = sadd.s32 1, %s27
    $region7: #{tpu_custom_call.1} parent=1 // loop_footer_branch
      %26 = sbr.rel target = $region3
    $region8: #{tpu_custom_call.1} parent=1 // loop_exit
      _
    %269 = vsyncpa [#allocation6], 1
    %s270 = scalar_lea.sflag [#allocation6], 1
    %271 = vsyncpa %s270, 1
    %272 = vsyncpa [#allocation9], 1
    %s273 = scalar_lea.sflag [#allocation9], 1
    %274 = vsyncpa %s273, 1
    %275 = vsyncpa [#allocation7], 1
    %s276 = scalar_lea.sflag [#allocation7], 1
    %277 = vsyncpa %s276, 1

</llo_original>
